<compile_context>
chip_gen: v6e
topology: v6e:2x2x1
jax: 0.10.0
libtpu: 0.0.40
codegen_flags: <defaults>
</compile_context>

<pallas_src>
import functools

import jax
import jax.numpy as jnp
from jax.experimental import pallas as pl
from jax.experimental.pallas import tpu as pltpu


_LANE_CHUNK = 4096        # inner compute sub-chunk (lanes); multiple of 128
_MIN_SPLIT_LANES = 8192   # don't split the batch across grid steps below this per-step size


def _round_up(n, m):
    return ((n + m - 1) // m) * m


def _choose_tile(batch, block_b):
    """Pick a lane-dense batch tile (multiple of 128)."""
    block_b = max(128, _round_up(block_b, 128))
    bp = _round_up(batch, 128)
    if bp > block_b:
        # Large batch: fixed tile, grid has >= 2 steps automatically.
        return block_b
    if bp >= 2 * _MIN_SPLIT_LANES:
        # Medium batch: split into two tiles so both v7x TensorCores get work
        # ("parallel" grid axis); each half is still big enough to hide the
        # ~0.35 us/step overhead.
        return _round_up((bp + 1) // 2, 128)
    # Small batch: a single lane-dense tile is cheapest.
    return bp


def _mlp_kernel(xt_ref, w1t_ref, b1_ref, w2t_ref, b2_ref, ot_ref):
    # Per grid step ("batch on lanes" layout):
    #   xt_ref : (9, TB)    activations, batch on the 128-wide lane axis
    #   w1t_ref: (16, 9)    fc1 weight (PyTorch [out, in] layout), VMEM-resident
    #   b1_ref : (16, 1)
    #   w2t_ref: (5, 16)    fc2 weight
    #   b2_ref : (5, 1)
    #   ot_ref : (5, TB)
    tb = ot_ref.shape[-1]

    # Tiny weights/biases: load once per grid step, reuse across sub-chunks.
    w1t = w1t_ref[...]
    b1 = b1_ref[...]
    w2t = w2t_ref[...]
    b2 = b2_ref[...]

    def compute(start, size):
        xt = xt_ref[:, pl.ds(start, size)]                       # (9, size)
        h = jnp.dot(w1t, xt, preferred_element_type=jnp.float32)  # (16, size) on MXU
        h = jnp.maximum(h + b1, 0.0)                               # bias + ReLU on VPU
        y = jnp.dot(w2t, h, preferred_element_type=jnp.float32)   # (5, size) on MXU
        ot_ref[:, pl.ds(start, size)] = y + b2

    # Sub-chunk the lane (batch) axis so intermediates stay small even for huge
    # tiles; the BlockSpec DMA granule remains the full (9, TB)/(5, TB) tile.
    chunk = min(_LANE_CHUNK, tb)
    nfull = tb // chunk

    if nfull <= 1:
        compute(0, chunk)
    else:
        @pl.loop(0, nfull)
        def _(c):
            compute(pl.multiple_of(c * chunk, 128), chunk)

    rem = tb - nfull * chunk          # static; multiple of 128 by construction
    if rem:
        compute(nfull * chunk, rem)


def prediction_model_forward_t(xt, w1t, b1, w2t, b2, *, block_b=65536):
    """Feature-major fast path: xt (9, B) -> (5, B).  No wrapper relayouts at all.

    w1t: (16, 9), b1: (16,), w2t: (5, 16), b2: (5,)  (PyTorch [out, in] layout).
    """
    in_dim, batch = xt.shape
    hid = w1t.shape[0]
    out_dim = w2t.shape[0]

    b1c = b1.reshape(hid, 1)
    b2c = b2.reshape(out_dim, 1)

    tb = _choose_tile(batch, block_b)
    grid = (pl.cdiv(batch, tb),)      # ragged last block handled by Pallas masking

    cost = pl.CostEstimate(
        flops=2 * batch * (in_dim * hid + hid * out_dim),
        transcendentals=0,
        bytes_accessed=batch * (in_dim + out_dim) * 4
        + (in_dim * hid + hid + hid * out_dim + out_dim) * 4,
    )

    return pl.pallas_call(
        _mlp_kernel,
        out_shape=jax.ShapeDtypeStruct((out_dim, batch), jnp.float32),
        grid_spec=pltpu.PrefetchScalarGridSpec(
            num_scalar_prefetch=0,
            grid=grid,
            in_specs=[
                # activations: new lane-dense tile each step (double-buffered)
                pl.BlockSpec((in_dim, tb), lambda i: (0, i)),
                # weights / biases: constant blocks, stay VMEM-resident
                pl.BlockSpec((hid, in_dim), lambda i: (0, 0)),
                pl.BlockSpec((hid, 1), lambda i: (0, 0)),
                pl.BlockSpec((out_dim, hid), lambda i: (0, 0)),
                pl.BlockSpec((out_dim, 1), lambda i: (0, 0)),
            ],
            out_specs=pl.BlockSpec((out_dim, tb), lambda i: (0, i)),
        ),
        compiler_params=pltpu.CompilerParams(
            dimension_semantics=("parallel",),      # megacore-shardable on v7x
            vmem_limit_bytes=32 * 1024 * 1024,      # headroom over v5e's 16 MiB scoped default
        ),
        cost_estimate=cost,
    )(xt, w1t, b1c, w2t, b2c)


def prediction_model_forward(x, w1, b1, w2, b2, *, block_b=65536):
    """PyTorch-layout wrapper: x (B, 9) f32 -> (B, 5) f32, y = relu(x@w1+b1)@w2+b2.

    w1: (9, 16), b1: (16,), w2: (16, 5), b2: (5,)  (math layout).
    The two .T below are the only remaining relayouts; callers that can keep a
    feature-major (features, batch) layout end-to-end should use
    prediction_model_forward_t directly and pay nothing.
    """
    out_t = prediction_model_forward_t(x.T, w1.T, b1, w2.T, b2, block_b=block_b)
    return out_t.T


def init_params(key, input_dim=9, hidden_dim=16, output_dim=5):
    """Deterministic init mimicking nn.Linear default: U(-1/sqrt(fan_in), +1/sqrt(fan_in))."""
    k1, k2, k3, k4 = jax.random.split(key, 4)
    bound1 = 1.0 / jnp.sqrt(jnp.float32(input_dim))
    bound2 = 1.0 / jnp.sqrt(jnp.float32(hidden_dim))
    # stored [in, out] so the math is x @ W + b (== PyTorch x @ W.T with W:[out,in])
    w1 = jax.random.uniform(k1, (input_dim, hidden_dim), jnp.float32, -bound1, bound1)
    b1 = jax.random.uniform(k2, (hidden_dim,), jnp.float32, -bound1, bound1)
    w2 = jax.random.uniform(k3, (hidden_dim, output_dim), jnp.float32, -bound2, bound2)
    b2 = jax.random.uniform(k4, (output_dim,), jnp.float32, -bound2, bound2)
    return w1, b1, w2, b2


def _reference(x, w1, b1, w2, b2):
    return jnp.maximum(x @ w1 + b1, 0.0) @ w2 + b2


def _check(x, params, **kw):
    out = jax.block_until_ready(prediction_model_forward(x, *params, **kw))
    ref = _reference(x, *params)
    assert out.shape == ref.shape
    assert jnp.allclose(out, ref, atol=1e-5, rtol=1e-5), \
        f"mismatch: max abs err {jnp.max(jnp.abs(out - ref))}"
    return out


if __name__ == "__main__":
    key = jax.random.PRNGKey(0)
    kx1, kx2, kx3, kp = jax.random.split(key, 4)

    input_dim, hidden_dim, output_dim = 9, 16, 5
    params = init_params(kp, input_dim, hidden_dim, output_dim)

    # 1) Small demo batch (9 inputs: 3 embedding scores + 1 volatility + 5 past prices).
    x1 = jax.random.normal(kx1, (8, input_dim), dtype=jnp.float32)
    _check(x1, params)

    # 2) Ragged batch, single tile (masked edge block, no jnp.pad anywhere).
    x2 = jax.random.normal(kx2, (300, input_dim), dtype=jnp.float32)
    _check(x2, params)

    # 3) Same data, forced multi-step grid -> exercises the pipelined path and the
    #    masked final block of a >1-step grid.
    _check(x2, params, block_b=128)

    # 4) Mid-size batch -> exercises the inner pl.loop sub-chunking + static
    #    remainder chunk + masked tail in one go.
    x3 = jax.random.normal(kx3, (9000, input_dim), dtype=jnp.float32)
    _check(x3, params)

    print("KERNEL_OK")
</pallas_src>

<mosaic_0001>
module attributes {stable_mosaic.version = 11 : i64} {
  func.func @_mlp_kernel(%arg0: i32, %arg1: memref<9x128xf32, #tpu.memory_space<vmem>>, %arg2: memref<16x9xf32, #tpu.memory_space<vmem>>, %arg3: memref<16x1xf32, #tpu.memory_space<vmem>>, %arg4: memref<5x16xf32, #tpu.memory_space<vmem>>, %arg5: memref<5x1xf32, #tpu.memory_space<vmem>>, %arg6: memref<5x128xf32, #tpu.memory_space<vmem>>) attributes {dimension_semantics = [#tpu.dimension_semantics<parallel>], iteration_bounds = array<i64: 1>, scalar_prefetch = 0 : i64, scratch_operands = 0 : i64, tpu.core_type = #tpu.core_type<tc>, window_params = [{transform_indices = @transform_0, window_bounds = array<i64: 9, 128>}, {pipeline_mode = #tpu.pipeline_mode<synchronous>, transform_indices = @transform_1, window_bounds = array<i64: 16, 9>}, {pipeline_mode = #tpu.pipeline_mode<synchronous>, transform_indices = @transform_2, window_bounds = array<i64: 16, 1>}, {pipeline_mode = #tpu.pipeline_mode<synchronous>, transform_indices = @transform_3, window_bounds = array<i64: 5, 16>}, {pipeline_mode = #tpu.pipeline_mode<synchronous>, transform_indices = @transform_4, window_bounds = array<i64: 5, 1>}, {transform_indices = @transform_5, window_bounds = array<i64: 5, 128>}]} {
    %c0 = arith.constant 0 : index
    %c0_0 = arith.constant 0 : index
    %0 = vector.load %arg2[%c0, %c0_0] : memref<16x9xf32, #tpu.memory_space<vmem>>, vector<16x9xf32>
    %c0_1 = arith.constant 0 : index
    %c0_2 = arith.constant 0 : index
    %1 = vector.load %arg3[%c0_1, %c0_2] : memref<16x1xf32, #tpu.memory_space<vmem>>, vector<16x1xf32>
    %c0_3 = arith.constant 0 : index
    %c0_4 = arith.constant 0 : index
    %2 = vector.load %arg4[%c0_3, %c0_4] : memref<5x16xf32, #tpu.memory_space<vmem>>, vector<5x16xf32>
    %c0_5 = arith.constant 0 : index
    %c0_6 = arith.constant 0 : index
    %3 = vector.load %arg5[%c0_5, %c0_6] : memref<5x1xf32, #tpu.memory_space<vmem>>, vector<5x1xf32>
    %c0_7 = arith.constant 0 : index
    %c0_8 = arith.constant 0 : index
    %4 = vector.load %arg1[%c0_7, %c0_8] : memref<9x128xf32, #tpu.memory_space<vmem>>, vector<9x128xf32>
    %cst = arith.constant dense<0.000000e+00> : vector<16x128xf32>
    %5 = tpu.matmul %0, %4, %cst {dimension_numbers = #tpu.dot_dimension_numbers<[1], [0], [0], [1], [0, 0, 1, 1], [], []>} : vector<16x9xf32>, vector<9x128xf32>, vector<16x128xf32> -> vector<16x128xf32>
    %6 = vector.broadcast %1 : vector<16x1xf32> to vector<16x128xf32>
    %7 = arith.addf %5, %6 : vector<16x128xf32>
    %cst_9 = arith.constant 0.000000e+00 : f32
    %8 = vector.broadcast %cst_9 : f32 to vector<16x128xf32>
    %9 = arith.maximumf %7, %8 : vector<16x128xf32>
    %cst_10 = arith.constant dense<0.000000e+00> : vector<5x128xf32>
    %10 = tpu.matmul %2, %9, %cst_10 {dimension_numbers = #tpu.dot_dimension_numbers<[1], [0], [0], [1], [0, 0, 1, 1], [], []>} : vector<5x16xf32>, vector<16x128xf32>, vector<5x128xf32> -> vector<5x128xf32>
    %11 = vector.broadcast %3 : vector<5x1xf32> to vector<5x128xf32>
    %12 = arith.addf %10, %11 : vector<5x128xf32>
    %c0_11 = arith.constant 0 : index
    %c0_12 = arith.constant 0 : index
    %13 = vector.load %arg6[%c0_11, %c0_12] : memref<5x128xf32, #tpu.memory_space<vmem>>, vector<5x128xf32>
    tpu.vector_store %arg6[%c0_11, %c0_12], %12 {strides = array<i32>} : memref<5x128xf32, #tpu.memory_space<vmem>>, vector<5x128xf32>,
    return
  }
  func.func @transform_0(%arg0: i32) -> (i32, i32) {
    %c0_i32 = arith.constant 0 : i32
    %c0_i32_0 = arith.constant 0 : i32
    return %c0_i32, %arg0 : i32, i32
  }
  func.func @transform_1(%arg0: i32) -> (i32, i32) {
    %c0_i32 = arith.constant 0 : i32
    %c0_i32_0 = arith.constant 0 : i32
    %c0_i32_1 = arith.constant 0 : i32
    return %c0_i32, %c0_i32_0 : i32, i32
  }
  func.func @transform_2(%arg0: i32) -> (i32, i32) {
    %c0_i32 = arith.constant 0 : i32
    %c0_i32_0 = arith.constant 0 : i32
    %c0_i32_1 = arith.constant 0 : i32
    return %c0_i32, %c0_i32_0 : i32, i32
  }
  func.func @transform_3(%arg0: i32) -> (i32, i32) {
    %c0_i32 = arith.constant 0 : i32
    %c0_i32_0 = arith.constant 0 : i32
    %c0_i32_1 = arith.constant 0 : i32
    return %c0_i32, %c0_i32_0 : i32, i32
  }
  func.func @transform_4(%arg0: i32) -> (i32, i32) {
    %c0_i32 = arith.constant 0 : i32
    %c0_i32_0 = arith.constant 0 : i32
    %c0_i32_1 = arith.constant 0 : i32
    return %c0_i32, %c0_i32_0 : i32, i32
  }
  func.func @transform_5(%arg0: i32) -> (i32, i32) {
    %c0_i32 = arith.constant 0 : i32
    %c0_i32_0 = arith.constant 0 : i32
    return %c0_i32, %arg0 : i32, i32
  }
}

</mosaic_0001>

<llo_original>
// kernel: tpu_custom_call.1
$region0: #{tpu_custom_call.1}
  #allocation0 [shape = 'u32[]', space=smem, size = 0x4, offset = 0x4, fixed_abs, tag = 'smem constant byte address 0x4 - core index']
  #allocation1 [shape = 'u32[144,128]{1,0:T(1,128)}', space=vmem, size = 0x12000, scoped, tag = 'internal scratch']
  %s0 = inlined_call_operand.vmem [shape: f32[9,8], index: 0, kind: input, shape index: {}]
  %s1 = inlined_call_operand.vmem [shape: f32[16,9], index: 1, kind: input, shape index: {}]
  %s2 = inlined_call_operand.vmem [shape: f32[16,1], index: 2, kind: input, shape index: {}]
  %s3 = inlined_call_operand.vmem [shape: f32[5,16], index: 3, kind: input, shape index: {}]
  %s4 = inlined_call_operand.vmem [shape: f32[5,1], index: 4, kind: input, shape index: {}]
  %s5 = inlined_call_operand.hbm [shape: f32[5,8], index: 5, kind: output, shape index: {}]
  %s6 = sld [smem:[#allocation0]]
  $region30: #{tpu_custom_call.1} parent=0
    _
  %s8 = ssub.s32 1, %s6
  %s9 = scalar_select 0, %s8, %s6
  $region1: #{tpu_custom_call.1} parent=0
    #allocation2 [shape = 'u8[4096]{0}', space=vmem, size = 0x1000, scoped, tag = 'output window, operand 0, single buffered']
    #allocation3 [shape = 's32[1]{0}', space=sflag, size = 0x4, scoped, tag = 'scoped memory for tpu_custom_call.1']
    %10 = vsyncpa [#allocation3], 0
    // Predicated region
    $region2: #{tpu_custom_call.1} parent=1 // pred_check
      _
    $region3: #{tpu_custom_call.1} parent=1 // pred_check_branch
      %12 = sbr.rel (0) target = $region5
    $region4: #{tpu_custom_call.1} parent=1 // pred_region
      _
    $region5: #{tpu_custom_call.1} parent=1 // pred_fallthru
      _
    // Predicated region
    $region6: #{tpu_custom_call.1} parent=1 // pred_check
      _
    $region7: #{tpu_custom_call.1} parent=1 // pred_check_branch
      %14 = sbr.rel (0) target = $region9
    $region8: #{tpu_custom_call.1} parent=1 // pred_region
      _
    $region9: #{tpu_custom_call.1} parent=1 // pred_fallthru
      _
    // Predicated region
    $region10: #{tpu_custom_call.1} parent=1 // pred_check
      _
    $region11: #{tpu_custom_call.1} parent=1 // pred_check_branch
      %16 = sbr.rel (0) target = $region13
    $region12: #{tpu_custom_call.1} parent=1 // pred_region
      _
    $region13: #{tpu_custom_call.1} parent=1 // pred_fallthru
      _
    // Predicated region
    $region14: #{tpu_custom_call.1} parent=1 // pred_check
      _
    $region15: #{tpu_custom_call.1} parent=1 // pred_check_branch
      %18 = sbr.rel (0) target = $region17
    $region16: #{tpu_custom_call.1} parent=1 // pred_region
      _
    $region17: #{tpu_custom_call.1} parent=1 // pred_fallthru
      _
    // Predicated region
    $region18: #{tpu_custom_call.1} parent=1 // pred_check
      _
    $region19: #{tpu_custom_call.1} parent=1 // pred_check_branch
      %20 = sbr.rel (0) target = $region21
    $region20: #{tpu_custom_call.1} parent=1 // pred_region
      _
    $region21: #{tpu_custom_call.1} parent=1 // pred_fallthru
      _
    %v21 = vld [vmem:[%s1] sm:$0xff]
    %v22 = vld [vmem:[%s1 + $0x8] sm:$0xff]
    %v23 = vld [vmem:[%s2] sm:$0xff]
    %v24 = vld [vmem:[%s2 + $0x8] sm:$0xff]
    %v25 = vld [vmem:[%s3] sm:$0x1f]
    %v26 = vld [vmem:[%s4] sm:$0x1f]
    %v27 = vld [vmem:[%s0] sm:$0xff]
    %v28 = vld [vmem:[%s0 + $0x8] sm:$0x1]
    %30 = vset.pattern.permute.xlu0 0
    %31 = vperm.xlu0 %30, %v23
    %v32 = vpop.permute.xlu0 %31
    %35 = vset.pattern.permute.xlu0 0
    %36 = vperm.xlu0 %35, %v24
    %v37 = vpop.permute.xlu0 %36
    %vm39 = vcmask 72704
    %v41 = vsel %vm39, %v21, 0
    %v44 = vsel %vm39, %v22, 0
    %vm46 = vcmask 1040384
    %v48 = vsel %vm46, %v28, 0
    %50 = vmatprep.subr.mxu0 0.0
    %51 = vmatpush1.msra.mxu0 0.0
    %52 = vmatprep.subr.mxu0 0.0
    %53 = vmatpush1.msra.mxu0 0.0
    %54 = vmatprep.subr.mxu0 0.0
    %55 = vmatpush1.msra.mxu0 0.0
    %56 = vmatprep.subr.mxu0 0.0
    %57 = vmatpush1.msra.mxu0 0.0
    %58 = vmatprep.subr.mxu0 0.0
    %59 = vmatpush1.msra.mxu0 0.0
    %60 = vmatprep.subr.mxu0 0.0
    %61 = vmatpush1.msra.mxu0 0.0
    %62 = vmatprep.subr.mxu0 0.0
    %63 = vmatpush1.msra.mxu0 0.0
    %64 = vmatprep.subr.mxu0 0.0
    %65 = vmatpush1.msra.mxu0 0.0
    %66 = vmatprep.subr.mxu0 0.0
    %67 = vmatpush1.msra.mxu0 0.0
    %68 = vmatprep.subr.mxu0 0.0
    %69 = vmatpush1.msra.mxu0 0.0
    %70 = vmatprep.subr.mxu0 0.0
    %71 = vmatpush1.msra.mxu0 0.0
    %72 = vmatprep.subr.mxu0 0.0
    %73 = vmatpush1.msra.mxu0 0.0
    %74 = vmatprep.subr.mxu0 0.0
    %75 = vmatpush1.msra.mxu0 0.0
    %76 = vmatprep.subr.mxu0 0.0
    %77 = vmatpush1.msra.mxu0 0.0
    %78 = vmatprep.subr.mxu0 0.0
    %79 = vmatpush1.msra.mxu0 %v48
    %80 = vmatprep.subr.mxu0 0.0
    %81 = vmatpush1.msra.mxu0 %v27
    %82 = vmatprep.subr.mxu0 0.0
    %83 = vmatpush2.msra.mxu0 0.0
    %84 = vmatprep.subr.mxu0 0.0
    %85 = vmatpush2.msra.mxu0 0.0
    %86 = vmatprep.subr.mxu0 0.0
    %87 = vmatpush2.msra.mxu0 0.0
    %88 = vmatprep.subr.mxu0 0.0
    %89 = vmatpush2.msra.mxu0 0.0
    %90 = vmatprep.subr.mxu0 0.0
    %91 = vmatpush2.msra.mxu0 0.0
    %92 = vmatprep.subr.mxu0 0.0
    %93 = vmatpush2.msra.mxu0 0.0
    %94 = vmatprep.subr.mxu0 0.0
    %95 = vmatpush2.msra.mxu0 0.0
    %96 = vmatprep.subr.mxu0 0.0
    %97 = vmatpush2.msra.mxu0 0.0
    %98 = vmatprep.subr.mxu0 0.0
    %99 = vmatpush2.msra.mxu0 0.0
    %100 = vmatprep.subr.mxu0 0.0
    %101 = vmatpush2.msra.mxu0 0.0
    %102 = vmatprep.subr.mxu0 0.0
    %103 = vmatpush2.msra.mxu0 0.0
    %104 = vmatprep.subr.mxu0 0.0
    %105 = vmatpush2.msra.mxu0 0.0
    %106 = vmatprep.subr.mxu0 0.0
    %107 = vmatpush2.msra.mxu0 0.0
    %108 = vmatprep.subr.mxu0 0.0
    %109 = vmatpush2.msra.mxu0 0.0
    %110 = vmatprep.subr.mxu0 0.0
    %111 = vmatpush2.msra.mxu0 0.0
    %112 = vmatprep.subr.mxu0 0.0
    %113 = vmatpush2.msra.mxu0 0.0
    %114 = vmatprep.mubr.f32.mxu0 0.0
    %115 = vmatmul.mubr.f32.gmra.mxu0 %v41
    %v116 = vpop.f32.mrf.mxu0
    %v117 = vadd.f32 %v32, %v116
    %v118 = vpop.f32.mrf.mxu0
    %119 = vmatprep.mubr.f32.mxu0 0.0
    %120 = vmatmul.mubr.f32.gmra.mxu0 %v44
    %v121 = vpop.f32.mrf.mxu0
    %v122 = vadd.f32 %v37, %v121
    %v123 = vpop.f32.mrf.mxu0
    %124 = vdwg.mxu0
    %v125 = vmax.f32 %v117, 0.0
    %v126 = vmax.f32 %v122, 0.0
    %128 = vset.pattern.permute.xlu0 0
    %129 = vperm.xlu0 %128, %v26
    %v130 = vpop.permute.xlu0 %129
    %vm132 = vcmask 130048
    %v134 = vsel %vm132, %v25, 0
    %136 = vmatprep.subr.mxu0 0.0
    %137 = vmatpush1.msra.mxu0 0.0
    %138 = vmatprep.subr.mxu0 0.0
    %139 = vmatpush1.msra.mxu0 0.0
    %140 = vmatprep.subr.mxu0 0.0
    %141 = vmatpush1.msra.mxu0 0.0
    %142 = vmatprep.subr.mxu0 0.0
    %143 = vmatpush1.msra.mxu0 0.0
    %144 = vmatprep.subr.mxu0 0.0
    %145 = vmatpush1.msra.mxu0 0.0
    %146 = vmatprep.subr.mxu0 0.0
    %147 = vmatpush1.msra.mxu0 0.0
    %148 = vmatprep.subr.mxu0 0.0
    %149 = vmatpush1.msra.mxu0 0.0
    %150 = vmatprep.subr.mxu0 0.0
    %151 = vmatpush1.msra.mxu0 0.0
    %152 = vmatprep.subr.mxu0 0.0
    %153 = vmatpush1.msra.mxu0 0.0
    %154 = vmatprep.subr.mxu0 0.0
    %155 = vmatpush1.msra.mxu0 0.0
    %156 = vmatprep.subr.mxu0 0.0
    %157 = vmatpush1.msra.mxu0 0.0
    %158 = vmatprep.subr.mxu0 0.0
    %159 = vmatpush1.msra.mxu0 0.0
    %160 = vmatprep.subr.mxu0 0.0
    %161 = vmatpush1.msra.mxu0 0.0
    %162 = vmatprep.subr.mxu0 0.0
    %163 = vmatpush1.msra.mxu0 0.0
    %164 = vmatprep.subr.mxu0 0.0
    %165 = vmatpush1.msra.mxu0 %v126
    %166 = vmatprep.subr.mxu0 0.0
    %167 = vmatpush1.msra.mxu0 %v125
    %168 = vmatprep.subr.mxu0 0.0
    %169 = vmatpush2.msra.mxu0 0.0
    %170 = vmatprep.subr.mxu0 0.0
    %171 = vmatpush2.msra.mxu0 0.0
    %172 = vmatprep.subr.mxu0 0.0
    %173 = vmatpush2.msra.mxu0 0.0
    %174 = vmatprep.subr.mxu0 0.0
    %175 = vmatpush2.msra.mxu0 0.0
    %176 = vmatprep.subr.mxu0 0.0
    %177 = vmatpush2.msra.mxu0 0.0
    %178 = vmatprep.subr.mxu0 0.0
    %179 = vmatpush2.msra.mxu0 0.0
    %180 = vmatprep.subr.mxu0 0.0
    %181 = vmatpush2.msra.mxu0 0.0
    %182 = vmatprep.subr.mxu0 0.0
    %183 = vmatpush2.msra.mxu0 0.0
    %184 = vmatprep.subr.mxu0 0.0
    %185 = vmatpush2.msra.mxu0 0.0
    %186 = vmatprep.subr.mxu0 0.0
    %187 = vmatpush2.msra.mxu0 0.0
    %188 = vmatprep.subr.mxu0 0.0
    %189 = vmatpush2.msra.mxu0 0.0
    %190 = vmatprep.subr.mxu0 0.0
    %191 = vmatpush2.msra.mxu0 0.0
    %192 = vmatprep.subr.mxu0 0.0
    %193 = vmatpush2.msra.mxu0 0.0
    %194 = vmatprep.subr.mxu0 0.0
    %195 = vmatpush2.msra.mxu0 0.0
    %196 = vmatprep.subr.mxu0 0.0
    %197 = vmatpush2.msra.mxu0 0.0
    %198 = vmatprep.subr.mxu0 0.0
    %199 = vmatpush2.msra.mxu0 0.0
    %200 = vmatprep.mubr.f32.mxu0 0.0
    %201 = vmatmul.mubr.f32.gmra.mxu0 %v134
    %v202 = vpop.f32.mrf.mxu0
    %v203 = vadd.f32 %v130, %v202
    %v204 = vpop.f32.mrf.mxu0
    %205 = vdwg.mxu0
    %206 = vst [vmem:[#allocation2] sm:$0x1f] %v203
    // Predicated region
    $region22: #{tpu_custom_call.1} parent=1 // pred_check
      _
    $region23: #{tpu_custom_call.1} parent=1 // pred_check_branch
      %208 = sbr.rel (0) target = $region25
    $region24: #{tpu_custom_call.1} parent=1 // pred_region
      %s210 = ssub.s32 128, 128
      %211 = vsyncadd [#allocation3], %s210
      %s213 = sshll.u32 [#allocation2], 4
      %s214 = int_to_ptr.vmem [resolvable:$true] %s213
      %216 = dma.vmem_to_hbm [thread:$0]  %s214, 128, %s5, [#allocation3]
    $region25: #{tpu_custom_call.1} parent=1 // pred_fallthru
      _
    // Predicated region
    $region26: #{tpu_custom_call.1} parent=1 // pred_check
      _
    $region27: #{tpu_custom_call.1} parent=1 // pred_check_branch
      %218 = sbr.rel (0) target = $region29
    $region28: #{tpu_custom_call.1} parent=1 // pred_region
      %219 = dma.done [#allocation3], 128
    $region29: #{tpu_custom_call.1} parent=1 // pred_fallthru
      _
    %220 = vsyncpa [#allocation3], 1

</llo_original>
